<compile_context>
chip_gen: v7x
topology: tpu7x:2x2x1
jax: 0.10.0
libtpu: 0.0.40
codegen_flags: <defaults>
</compile_context>

<pallas_src>
import jax
import jax.numpy as jnp
from jax.experimental import pallas as pl
from jax.experimental.pallas import tpu as pltpu


def _round_up(x, m):
    return ((x + m - 1) // m) * m


def _resblock_kernel(x_ref, wt_ref, scale_ref, shift_ref, o_ref, acc_ref):
    """grid = (batch tiles i, out-feature tiles j, in-feature tiles k).

    o_ref and acc_ref are resident across k (their index maps ignore k)."""
    j = pl.program_id(1)
    k = pl.program_id(2)

    @pl.when(k == 0)
    def _():
        acc_ref[...] = jnp.zeros_like(acc_ref)

    # Residual stash: the Linear is square, so the x k-tile with k == j holds exactly the
    # columns of this output tile.  Writing it into the resident output block means x is
    # DMA'd from HBM only once (no separate residual input).
    @pl.when(k == j)
    def _():
        o_ref[...] = x_ref[...].astype(o_ref.dtype)

    # ReLU on bf16 vregs (identical to relu-then-cast), bf16 MXU operands, f32 accumulate.
    h = jnp.maximum(x_ref[...].astype(jnp.bfloat16), 0)
    acc_ref[...] += jnp.dot(h, wt_ref[...], preferred_element_type=jnp.float32)

    @pl.when(k == pl.num_programs(2) - 1)
    def _():
        # Folded BatchNorm (+Linear bias) scale/shift, then residual add; all f32 in-register.
        bn = acc_ref[...] * scale_ref[...] + shift_ref[...]
        o_ref[...] = (o_ref[...].astype(jnp.float32) + bn).astype(o_ref.dtype)


def prepare_resblock_params(w, b, gamma, beta, running_mean, running_var, eps=1e-5):
    """One-time (out of hot path) prep: transpose weight, cast to bf16, fold bias+BN,
    and pad the feature dim to a multiple of 128 (lane-dense)."""
    dim = w.shape[0]
    dim_p = _round_up(dim, 128)

    inv_std = 1.0 / jnp.sqrt(running_var.astype(jnp.float32) + eps)
    scale = (gamma * inv_std).astype(jnp.float32)                      # (dim,)
    shift = (beta + (b - running_mean) * scale).astype(jnp.float32)    # Linear bias folded in

    wt = w.T.astype(jnp.bfloat16)                                      # (dim_in, dim_out)
    pad = dim_p - dim
    wt_p = jnp.pad(wt, ((0, pad), (0, pad)))                           # padded rows/cols -> 0
    scale_p = jnp.pad(scale.reshape(1, dim), ((0, 0), (0, pad)))       # padded cols -> 0
    shift_p = jnp.pad(shift.reshape(1, dim), ((0, 0), (0, pad)))       # padded cols -> 0
    return wt_p, scale_p, shift_p, dim, dim_p


def _vmem_budget_bytes():
    """~80% of this chip's physical VMEM (v5e/v6e: ~102 MiB, v7x: ~51 MiB), leaving
    headroom for Mosaic internal scratch.  Falls back to a v7x-safe value."""
    try:
        cap = int(pltpu.get_tpu_info().vmem_capacity_bytes)
    except Exception:
        cap = 64 * 1024 * 1024
    return (cap * 4) // 5


def _pick_feature_tile(dim_p, budget):
    # Whole bf16 W resident in VMEM (DMA'd once for the entire grid) when it fits comfortably.
    if 2 * dim_p * dim_p * 2 <= budget // 2:
        return dim_p
    # Otherwise: largest multiple of 128 that divides dim_p and is <= 1024 (bounds VMEM,
    # and guarantees no ragged / out-of-bounds K tile).
    bf = min(1024, dim_p)
    bf -= bf % 128
    while dim_p % bf:
        bf -= 128
    return bf


def _pick_batch_tile(n, dim_p, block_f, x_bytes, out_bytes, budget):
    w_bytes = 2 * block_f * block_f * 2                        # double-buffered bf16 W tile
    per_row = block_f * (2 * x_bytes + 2 * out_bytes + 4)      # x in, out, f32 acc (per row)
    avail = max(budget - w_bytes - 8 * dim_p * 4, per_row * 8)
    block_n = (avail // per_row) // 8 * 8
    block_n = int(max(8, min(block_n, 1024, _round_up(n, 8))))
    # With a fully resident W there is no W re-read cost to splitting the batch, so prefer
    # >=2 batch tiles when possible (lets v7x shard the 'parallel' axis over both cores).
    if block_f == dim_p and n >= 16:
        block_n = min(block_n, _round_up(pl.cdiv(n, 2), 8))
    return block_n


def resblock_forward(x, wt_p, scale_p, shift_p, dim, dim_p, out_dtype=None,
                     block_n=None, block_f=None):
    """x: (N, dim).  wt_p: (dim_p, dim_p) bf16 padded W^T.  scale_p/shift_p: (1, dim_p) f32.

    Pass x in bf16 to halve the activation DMA; the matmul path is bf16 either way and the
    BN epilogue / residual add stay in f32 in-register."""
    n = x.shape[0]
    out_dtype = out_dtype or x.dtype
    x_bytes = jnp.dtype(x.dtype).itemsize
    out_bytes = jnp.dtype(out_dtype).itemsize

    budget = _vmem_budget_bytes()
    if block_f is None:
        block_f = _pick_feature_tile(dim_p, budget)
    assert block_f % 128 == 0 and dim_p % block_f == 0, "feature tile must divide dim_p"
    if block_n is None:
        block_n = _pick_batch_tile(n, dim_p, block_f, x_bytes, out_bytes, budget)
    block_n = _round_up(block_n, 8)

    # Lane-dense features.  Preferred contract: caller already provides dim % 128 == 0
    # (then x goes straight to the kernel with no extra HBM pass); otherwise pad here.
    x_p = x if dim_p == dim else jnp.pad(x, ((0, 0), (0, dim_p - dim)))

    num_i = pl.cdiv(n, block_n)
    num_j = dim_p // block_f          # == number of K tiles (square Linear, block_j == block_k)
    grid = (num_i, num_j, num_j)

    need = (2 * block_n * block_f * x_bytes        # x tiles (double-buffered)
            + 2 * block_f * block_f * 2            # bf16 W tiles
            + 2 * block_n * block_f * out_bytes    # output tiles
            + block_n * block_f * 4                # f32 accumulator scratch
            + 8 * block_f * 4)                     # scale / shift
    vmem_limit = int(min(budget, max(2 * need, 32 * 1024 * 1024)))

    w_reads = 1 if num_j == 1 else num_i           # constant index map => single W DMA
    cost = pl.CostEstimate(
        flops=2 * n * dim_p * dim_p,
        transcendentals=0,
        bytes_accessed=(n * dim_p * x_bytes * num_j      # x once per output-feature tile
                        + w_reads * dim_p * dim_p * 2    # bf16 weight
                        + 2 * dim_p * 4                  # scale + shift
                        + n * dim_p * out_bytes),        # single output write
    )

    out_p = pl.pallas_call(
        _resblock_kernel,
        out_shape=jax.ShapeDtypeStruct((n, dim_p), out_dtype),
        grid_spec=pltpu.PrefetchScalarGridSpec(
            num_scalar_prefetch=0,
            grid=grid,
            in_specs=[
                pl.BlockSpec((block_n, block_f), lambda i, j, k: (i, k)),  # x (K tile)
                pl.BlockSpec((block_f, block_f), lambda i, j, k: (k, j)),  # W^T (bf16)
                pl.BlockSpec((1, block_f),       lambda i, j, k: (0, j)),  # folded BN scale
                pl.BlockSpec((1, block_f),       lambda i, j, k: (0, j)),  # folded BN+bias shift
            ],
            out_specs=pl.BlockSpec((block_n, block_f), lambda i, j, k: (i, j)),
            scratch_shapes=[pltpu.VMEM((block_n, block_f), jnp.float32)],
        ),
        compiler_params=pltpu.CompilerParams(
            dimension_semantics=("parallel", "parallel", "arbitrary"),
            vmem_limit_bytes=vmem_limit,
        ),
        cost_estimate=cost,
    )(x_p, wt_p, scale_p, shift_p)

    return out_p if dim_p == dim else out_p[:, :dim]


def resblock_reference(x, w, b, gamma, beta, running_mean, running_var, eps=1e-5):
    h = jnp.maximum(x, 0.0)
    z = h @ w.T + b
    bn = gamma * (z - running_mean) / jnp.sqrt(running_var + eps) + beta
    return x + bn


if __name__ == "__main__":
    key = jax.random.PRNGKey(0)
    k_x, k_w, k_b, k_g, k_beta, k_m, k_v = jax.random.split(key, 7)

    N, DIM = 8, 32

    x = jax.random.normal(k_x, (N, DIM), dtype=jnp.float32)

    # Deterministic synthetic parameters (shapes per nn.Linear(dim, dim) / nn.BatchNorm1d(dim)).
    bound = 1.0 / jnp.sqrt(DIM)
    w = jax.random.uniform(k_w, (DIM, DIM), minval=-bound, maxval=bound, dtype=jnp.float32)
    b = jax.random.uniform(k_b, (DIM,), minval=-bound, maxval=bound, dtype=jnp.float32)
    gamma = 1.0 + 0.1 * jax.random.normal(k_g, (DIM,), dtype=jnp.float32)
    beta = 0.1 * jax.random.normal(k_beta, (DIM,), dtype=jnp.float32)
    running_mean = 0.05 * jax.random.normal(k_m, (DIM,), dtype=jnp.float32)
    running_var = 1.0 + 0.1 * jax.random.uniform(k_v, (DIM,), dtype=jnp.float32)

    # One-time parameter prep (cached outside the hot path in real use).
    wt_p, scale_p, shift_p, dim, dim_p = prepare_resblock_params(
        w, b, gamma, beta, running_mean, running_var)

    out = resblock_forward(x, wt_p, scale_p, shift_p, dim, dim_p)
    out = jax.block_until_ready(out)

    ref = resblock_reference(x, w, b, gamma, beta, running_mean, running_var)
    assert out.shape == (N, DIM)
    # bf16 MXU operands => compare against the f32 reference with a bf16-appropriate tolerance.
    assert jnp.allclose(out, ref, atol=5e-2, rtol=5e-2), "mismatch vs reference"

    print("KERNEL_OK")
</pallas_src>

<mosaic_0001>
module attributes {stable_mosaic.version = 11 : i64} {
  func.func @_resblock_kernel(%arg0: i32, %arg1: i32, %arg2: i32, %arg3: memref<8x128xf32, #tpu.memory_space<vmem>>, %arg4: memref<128x128xbf16, #tpu.memory_space<vmem>>, %arg5: memref<1x128xf32, #tpu.memory_space<vmem>>, %arg6: memref<1x128xf32, #tpu.memory_space<vmem>>, %arg7: memref<8x128xf32, #tpu.memory_space<vmem>>, %arg8: memref<8x128xf32, #tpu.memory_space<vmem>>) attributes {dimension_semantics = [#tpu.dimension_semantics<parallel>, #tpu.dimension_semantics<parallel>, #tpu.dimension_semantics<arbitrary>], iteration_bounds = array<i64: 1, 1, 1>, scalar_prefetch = 0 : i64, scratch_operands = 1 : i64, tpu.core_type = #tpu.core_type<tc>, window_params = [{transform_indices = @transform_0, window_bounds = array<i64: 8, 128>}, {transform_indices = @transform_1, window_bounds = array<i64: 128, 128>}, {transform_indices = @transform_2, window_bounds = array<i64: 1, 128>}, {transform_indices = @transform_3, window_bounds = array<i64: 1, 128>}, {transform_indices = @transform_4, window_bounds = array<i64: 8, 128>}]} {
    %c0_i32 = arith.constant 0 : i32
    %0 = arith.cmpi eq, %arg2, %c0_i32 : i32
    %1 = arith.extui %0 : i1 to i32
    %c0_i32_0 = arith.constant 0 : i32
    %2 = arith.cmpi ne, %1, %c0_i32_0 : i32
    scf.if %2 {
      %cst_12 = arith.constant 0.000000e+00 : f32
      %18 = vector.broadcast %cst_12 : f32 to vector<8x128xf32>
      %c0_13 = arith.constant 0 : index
      %c0_14 = arith.constant 0 : index
      %19 = vector.load %arg8[%c0_13, %c0_14] : memref<8x128xf32, #tpu.memory_space<vmem>>, vector<8x128xf32>
      tpu.vector_store %arg8[%c0_13, %c0_14], %18 {strides = array<i32>} : memref<8x128xf32, #tpu.memory_space<vmem>>, vector<8x128xf32>,
    } else {
    }
    %3 = arith.cmpi eq, %arg2, %arg1 : i32
    %4 = arith.extui %3 : i1 to i32
    %c0_i32_1 = arith.constant 0 : i32
    %5 = arith.cmpi ne, %4, %c0_i32_1 : i32
    scf.if %5 {
      %c0_12 = arith.constant 0 : index
      %c0_13 = arith.constant 0 : index
      %18 = vector.load %arg3[%c0_12, %c0_13] : memref<8x128xf32, #tpu.memory_space<vmem>>, vector<8x128xf32>
      %c0_14 = arith.constant 0 : index
      %c0_15 = arith.constant 0 : index
      %19 = vector.load %arg7[%c0_14, %c0_15] : memref<8x128xf32, #tpu.memory_space<vmem>>, vector<8x128xf32>
      tpu.vector_store %arg7[%c0_14, %c0_15], %18 {strides = array<i32>} : memref<8x128xf32, #tpu.memory_space<vmem>>, vector<8x128xf32>,
    } else {
    }
    %c0 = arith.constant 0 : index
    %c0_2 = arith.constant 0 : index
    %6 = vector.load %arg3[%c0, %c0_2] : memref<8x128xf32, #tpu.memory_space<vmem>>, vector<8x128xf32>
    %7 = arith.truncf %6 : vector<8x128xf32> to vector<8x128xbf16>
    %cst = arith.constant 0.000000e+00 : bf16
    %8 = vector.broadcast %cst : bf16 to vector<8x128xbf16>
    %9 = arith.maximumf %7, %8 : vector<8x128xbf16>
    %c0_3 = arith.constant 0 : index
    %c0_4 = arith.constant 0 : index
    %10 = vector.load %arg8[%c0_3, %c0_4] : memref<8x128xf32, #tpu.memory_space<vmem>>, vector<8x128xf32>
    %c0_5 = arith.constant 0 : index
    %c0_6 = arith.constant 0 : index
    %11 = vector.load %arg4[%c0_5, %c0_6] : memref<128x128xbf16, #tpu.memory_space<vmem>>, vector<128x128xbf16>
    %cst_7 = arith.constant dense<0.000000e+00> : vector<8x128xf32>
    %12 = tpu.matmul %9, %11, %cst_7 {dimension_numbers = #tpu.dot_dimension_numbers<[1], [0], [0], [1], [0, 0, 1, 1], [], []>} : vector<8x128xbf16>, vector<128x128xbf16>, vector<8x128xf32> -> vector<8x128xf32>
    %13 = arith.addf %10, %12 : vector<8x128xf32>
    %c0_8 = arith.constant 0 : index
    %c0_9 = arith.constant 0 : index
    %14 = vector.load %arg8[%c0_8, %c0_9] : memref<8x128xf32, #tpu.memory_space<vmem>>, vector<8x128xf32>
    tpu.vector_store %arg8[%c0_8, %c0_9], %13 {strides = array<i32>} : memref<8x128xf32, #tpu.memory_space<vmem>>, vector<8x128xf32>,
    %c0_i32_10 = arith.constant 0 : i32
    %15 = arith.cmpi eq, %arg2, %c0_i32_10 : i32
    %16 = arith.extui %15 : i1 to i32
    %c0_i32_11 = arith.constant 0 : i32
    %17 = arith.cmpi ne, %16, %c0_i32_11 : i32
    scf.if %17 {
      %c0_12 = arith.constant 0 : index
      %c0_13 = arith.constant 0 : index
      %18 = vector.load %arg8[%c0_12, %c0_13] : memref<8x128xf32, #tpu.memory_space<vmem>>, vector<8x128xf32>
      %c0_14 = arith.constant 0 : index
      %c0_15 = arith.constant 0 : index
      %19 = vector.load %arg5[%c0_14, %c0_15] : memref<1x128xf32, #tpu.memory_space<vmem>>, vector<1x128xf32>
      %20 = vector.broadcast %19 : vector<1x128xf32> to vector<8x128xf32>
      %21 = arith.mulf %18, %20 : vector<8x128xf32>
      %c0_16 = arith.constant 0 : index
      %c0_17 = arith.constant 0 : index
      %22 = vector.load %arg6[%c0_16, %c0_17] : memref<1x128xf32, #tpu.memory_space<vmem>>, vector<1x128xf32>
      %23 = vector.broadcast %22 : vector<1x128xf32> to vector<8x128xf32>
      %24 = arith.addf %21, %23 : vector<8x128xf32>
      %c0_18 = arith.constant 0 : index
      %c0_19 = arith.constant 0 : index
      %25 = vector.load %arg7[%c0_18, %c0_19] : memref<8x128xf32, #tpu.memory_space<vmem>>, vector<8x128xf32>
      %26 = arith.addf %25, %24 : vector<8x128xf32>
      %c0_20 = arith.constant 0 : index
      %c0_21 = arith.constant 0 : index
      %27 = vector.load %arg7[%c0_20, %c0_21] : memref<8x128xf32, #tpu.memory_space<vmem>>, vector<8x128xf32>
      tpu.vector_store %arg7[%c0_20, %c0_21], %26 {strides = array<i32>} : memref<8x128xf32, #tpu.memory_space<vmem>>, vector<8x128xf32>,
    } else {
    }
    return
  }
  func.func @transform_0(%arg0: i32, %arg1: i32, %arg2: i32) -> (i32, i32) {
    %c0_i32 = arith.constant 0 : i32
    return %arg0, %arg2 : i32, i32
  }
  func.func @transform_1(%arg0: i32, %arg1: i32, %arg2: i32) -> (i32, i32) {
    %c0_i32 = arith.constant 0 : i32
    return %arg2, %arg1 : i32, i32
  }
  func.func @transform_2(%arg0: i32, %arg1: i32, %arg2: i32) -> (i32, i32) {
    %c0_i32 = arith.constant 0 : i32
    %c0_i32_0 = arith.constant 0 : i32
    return %c0_i32, %arg1 : i32, i32
  }
  func.func @transform_3(%arg0: i32, %arg1: i32, %arg2: i32) -> (i32, i32) {
    %c0_i32 = arith.constant 0 : i32
    %c0_i32_0 = arith.constant 0 : i32
    return %c0_i32, %arg1 : i32, i32
  }
  func.func @transform_4(%arg0: i32, %arg1: i32, %arg2: i32) -> (i32, i32) {
    %c0_i32 = arith.constant 0 : i32
    return %arg0, %arg1 : i32, i32
  }
}

</mosaic_0001>

<llo_original>
// kernel: tpu_custom_call.1
$region0: #{tpu_custom_call.1}
  #allocation0 [shape = 'u32[]', space=smem, size = 0x4, offset = 0x4, fixed_abs, tag = 'smem constant byte address 0x4 - core index']
  #allocation1 [shape = 'u32[144,128]{1,0:T(1,128)}', space=vmem, size = 0x12000, scoped, tag = 'internal scratch']
  #allocation2 [shape = 'f32[8,128]{1,0:T(8,128)}', space=vmem, size = 0x1000, scoped, tag = 'scratch operand']
  %s0 = inlined_call_operand.hbm [shape: f32[8,128], index: 0, kind: input, shape index: {}]
  %s1 = inlined_call_operand.hbm [shape: bf16[128,128], index: 1, kind: input, shape index: {}]
  %s2 = inlined_call_operand.vmem [shape: f32[1,128], index: 2, kind: input, shape index: {}]
  %s3 = inlined_call_operand.vmem [shape: f32[1,128], index: 3, kind: input, shape index: {}]
  %s4 = inlined_call_operand.hbm [shape: f32[8,128], index: 4, kind: output, shape index: {}]
  %s5 = sld [smem:[#allocation0]]
  $region46: #{tpu_custom_call.1} parent=0
    _
  %s7 = ssub.s32 1, %s5
  %s8 = scalar_select 0, %s7, %s5
  $region1: #{tpu_custom_call.1} parent=0
    #allocation3 [shape = 'u8[4096]{0}', space=vmem, size = 0x1000, scoped, tag = 'input window, operand 0, single buffered']
    #allocation4 [shape = 's32[1]{0}', space=sflag, size = 0x4, scoped, tag = 'scoped memory for tpu_custom_call.1']
    #allocation5 [shape = 's32[1]{0}', space=sflag, size = 0x4, scoped, tag = 'scoped memory for tpu_custom_call.1']
    #allocation6 [shape = 'u8[32768]{0}', space=vmem, size = 0x8000, scoped, tag = 'input window, operand 1, single buffered']
    #allocation7 [shape = 's32[1]{0}', space=sflag, size = 0x4, scoped, tag = 'scoped memory for tpu_custom_call.1']
    #allocation8 [shape = 'u8[4096]{0}', space=vmem, size = 0x1000, scoped, tag = 'output window, operand 0, single buffered']
    %9 = vsyncpa [#allocation4], 0
    %10 = vsyncpa [#allocation7], 0
    %11 = vsyncpa [#allocation5], 0
    // Predicated region
    $region2: #{tpu_custom_call.1} parent=1 // pred_check
      _
    $region3: #{tpu_custom_call.1} parent=1 // pred_check_branch
      %13 = sbr.rel (0) target = $region5
    $region4: #{tpu_custom_call.1} parent=1 // pred_region
      %s15 = ssub.s32 128, 128
      %16 = vsyncadd [#allocation4], %s15
      %s18 = sshll.u32 [#allocation3], 4
      %s19 = int_to_ptr.vmem [resolvable:$true] %s18
      %21 = dma.hbm_to_vmem [thread:$0]  %s0, 128, %s19, [#allocation4]
    $region5: #{tpu_custom_call.1} parent=1 // pred_fallthru
      _
    // Predicated region
    $region6: #{tpu_custom_call.1} parent=1 // pred_check
      _
    $region7: #{tpu_custom_call.1} parent=1 // pred_check_branch
      %23 = sbr.rel (0) target = $region9
    $region8: #{tpu_custom_call.1} parent=1 // pred_region
      %s25 = ssub.s32 1024, 1024
      %26 = vsyncadd [#allocation7], %s25
      %s27 = sshll.u32 [#allocation6], 4
      %s28 = int_to_ptr.vmem [resolvable:$true] %s27
      %33 = dma.hbm_to_vmem [thread:$0]  %s1, 1024, %s28, [#allocation7], 64, 64, 4
    $region9: #{tpu_custom_call.1} parent=1 // pred_fallthru
      _
    // Predicated region
    $region10: #{tpu_custom_call.1} parent=1 // pred_check
      _
    $region11: #{tpu_custom_call.1} parent=1 // pred_check_branch
      %35 = sbr.rel (0) target = $region13
    $region12: #{tpu_custom_call.1} parent=1 // pred_region
      _
    $region13: #{tpu_custom_call.1} parent=1 // pred_fallthru
      _
    // Predicated region
    $region14: #{tpu_custom_call.1} parent=1 // pred_check
      _
    $region15: #{tpu_custom_call.1} parent=1 // pred_check_branch
      %37 = sbr.rel (0) target = $region17
    $region16: #{tpu_custom_call.1} parent=1 // pred_region
      _
    $region17: #{tpu_custom_call.1} parent=1 // pred_fallthru
      _
    // Predicated region
    $region18: #{tpu_custom_call.1} parent=1 // pred_check
      _
    $region19: #{tpu_custom_call.1} parent=1 // pred_check_branch
      %39 = sbr.rel (0) target = $region21
    $region20: #{tpu_custom_call.1} parent=1 // pred_region
      %40 = dma.done [#allocation4], 128
    $region21: #{tpu_custom_call.1} parent=1 // pred_fallthru
      _
    // Predicated region
    $region22: #{tpu_custom_call.1} parent=1 // pred_check
      _
    $region23: #{tpu_custom_call.1} parent=1 // pred_check_branch
      %42 = sbr.rel (0) target = $region25
    $region24: #{tpu_custom_call.1} parent=1 // pred_region
      %43 = dma.done [#allocation7], 1024
    $region25: #{tpu_custom_call.1} parent=1 // pred_fallthru
      _
    %p45 = scmp.eq.s32.totalorder 0, 0
    // Predicated region
    $region26: #{tpu_custom_call.1} parent=1 // pred_check
      %p46 = pneg %p45
    $region27: #{tpu_custom_call.1} parent=1 // pred_check_branch
      %48 = sbr.rel (%p46) target = $region29
    $region28: #{tpu_custom_call.1} parent=1 // pred_region
      %49 = vst [vmem:[#allocation2] sm:$0xff] 0.0
    $region29: #{tpu_custom_call.1} parent=1 // pred_fallthru
      _
    %p50 = scmp.eq.s32.totalorder 0, 0
    // Predicated region
    $region30: #{tpu_custom_call.1} parent=1 // pred_check
      %p51 = pneg %p50
    $region31: #{tpu_custom_call.1} parent=1 // pred_check_branch
      %53 = sbr.rel (%p51) target = $region33
    $region32: #{tpu_custom_call.1} parent=1 // pred_region
      %v54 = vld [vmem:[#allocation3] sm:$0xff]
      %55 = vst [vmem:[#allocation8] sm:$0xff] %v54
    $region33: #{tpu_custom_call.1} parent=1 // pred_fallthru
      _
    %v56 = vld [vmem:[#allocation3] sm:$0xff]
    %v57 = vpack.c.bf16 %v56, %v56
    %v58 = vmax.bf16 %v57, 0
    %v59 = vld [vmem:[#allocation2] sm:$0xff]
    %v60 = vld [vmem:[#allocation6] sm:$0xf]
    %v61 = vld [vmem:[#allocation6 + $0x4] sm:$0xf]
    %v62 = vld [vmem:[#allocation6 + $0x8] sm:$0xf]
    %v63 = vld [vmem:[#allocation6 + $0xc] sm:$0xf]
    %v64 = vld [vmem:[#allocation6 + $0x10] sm:$0xf]
    %v65 = vld [vmem:[#allocation6 + $0x14] sm:$0xf]
    %v66 = vld [vmem:[#allocation6 + $0x18] sm:$0xf]
    %v67 = vld [vmem:[#allocation6 + $0x1c] sm:$0xf]
    %v68 = vld [vmem:[#allocation6 + $0x20] sm:$0xf]
    %v69 = vld [vmem:[#allocation6 + $0x24] sm:$0xf]
    %v70 = vld [vmem:[#allocation6 + $0x28] sm:$0xf]
    %v71 = vld [vmem:[#allocation6 + $0x2c] sm:$0xf]
    %v72 = vld [vmem:[#allocation6 + $0x30] sm:$0xf]
    %v73 = vld [vmem:[#allocation6 + $0x34] sm:$0xf]
    %v74 = vld [vmem:[#allocation6 + $0x38] sm:$0xf]
    %v75 = vld [vmem:[#allocation6 + $0x3c] sm:$0xf]
    %v92 = vunpack.c.l.b16 %v60
    %v93 = vunpack.c.l.b16 %v61
    %v94 = vunpack.c.l.b16 %v62
    %v95 = vunpack.c.l.b16 %v63
    %v96 = vunpack.c.l.b16 %v64
    %v97 = vunpack.c.l.b16 %v65
    %v98 = vunpack.c.l.b16 %v66
    %v99 = vunpack.c.l.b16 %v67
    %v100 = vunpack.c.l.b16 %v68
    %v101 = vunpack.c.l.b16 %v69
    %v102 = vunpack.c.l.b16 %v70
    %v103 = vunpack.c.l.b16 %v71
    %v104 = vunpack.c.l.b16 %v72
    %v105 = vunpack.c.l.b16 %v73
    %v106 = vunpack.c.l.b16 %v74
    %v107 = vunpack.c.l.b16 %v75
    %v108 = vpack.c.b16 %v93, %v92
    %v109 = vpack.c.b16 %v95, %v94
    %v110 = vpack.c.b16 %v97, %v96
    %v111 = vpack.c.b16 %v99, %v98
    %v112 = vpack.c.b16 %v101, %v100
    %v113 = vpack.c.b16 %v103, %v102
    %v114 = vpack.c.b16 %v105, %v104
    %v115 = vpack.c.b16 %v107, %v106
    %124 = vmatprep.subr.bf16.mxu0 0
    %125 = vmatpush1.bf16.msra.mxu0 %v108
    %126 = vmatprep.subr.bf16.mxu0 0
    %127 = vmatpush1.bf16.msra.mxu0 %v109
    %128 = vmatprep.subr.bf16.mxu0 0
    %129 = vmatpush1.bf16.msra.mxu0 %v110
    %130 = vmatprep.subr.bf16.mxu0 0
    %131 = vmatpush1.bf16.msra.mxu0 %v111
    %132 = vmatprep.subr.bf16.mxu0 0
    %133 = vmatpush1.bf16.msra.mxu0 %v112
    %134 = vmatprep.subr.bf16.mxu0 0
    %135 = vmatpush1.bf16.msra.mxu0 %v113
    %136 = vmatprep.subr.bf16.mxu0 0
    %137 = vmatpush1.bf16.msra.mxu0 %v114
    %138 = vmatprep.subr.bf16.mxu0 0
    %139 = vmatpush1.bf16.msra.mxu0 %v115
    %140 = vmatprep.subr.bf16.mxu0 0
    %141 = vmatpush1.bf16.msra.mxu0 0
    %142 = vmatprep.subr.bf16.mxu0 0
    %143 = vmatpush1.bf16.msra.mxu0 0
    %144 = vmatprep.subr.bf16.mxu0 0
    %145 = vmatpush1.bf16.msra.mxu0 0
    %146 = vmatprep.subr.bf16.mxu0 0
    %147 = vmatpush1.bf16.msra.mxu0 0
    %148 = vmatprep.subr.bf16.mxu0 0
    %149 = vmatpush1.bf16.msra.mxu0 0
    %150 = vmatprep.subr.bf16.mxu0 0
    %151 = vmatpush1.bf16.msra.mxu0 0
    %152 = vmatprep.subr.bf16.mxu0 0
    %153 = vmatpush1.bf16.msra.mxu0 0
    %154 = vmatprep.subr.bf16.mxu0 0
    %155 = vmatpush1.bf16.msra.mxu0 0
    %156 = vmatprep.mubr.bf16.mxu0 0
    %157 = vmatmul.mubr.bf16.gmra.mrb[0].mxu0 %v58
    %v158 = vpop.f32.mrb[0].mxu0
    %v159 = vadd.f32 0.0, %v158
    %v160 = vpop.f32.mrb[0].mxu0
    %v161 = vpop.f32.mrb[0].mxu0
    %v162 = vpop.f32.mrb[0].mxu0
    %163 = vdwg.mxu0
    %v164 = vadd.f32 %v59, %v159
    %165 = vst [vmem:[#allocation2] sm:$0xff] %v164
    // Predicated region
    $region34: #{tpu_custom_call.1} parent=1 // pred_check
      %p166 = pneg %p45
    $region35: #{tpu_custom_call.1} parent=1 // pred_check_branch
      %168 = sbr.rel (%p166) target = $region37
    $region36: #{tpu_custom_call.1} parent=1 // pred_region
      %v169 = vld [vmem:[#allocation2] sm:$0xff]
      %v170 = vld [vmem:[%s2] sm:$0x1]
      %v172 = vlaneseq
      %v173 = vshrl.u32 %v172, 7
      %v174 = vsub.s32 0, %v173
      %v175 = vrot.slane %v170, %v174
      %v177 = vmul.f32 %v169, %v175
      %v178 = vld [vmem:[%s3] sm:$0x1]
      %v180 = vlaneseq
      %v181 = vshrl.u32 %v180, 7
      %v182 = vsub.s32 0, %v181
      %v183 = vrot.slane %v178, %v182
      %v185 = vadd.f32 %v177, %v183
      %v186 = vld [vmem:[#allocation8] sm:$0xff]
      %v187 = vadd.f32 %v186, %v185
      %188 = vst [vmem:[#allocation8] sm:$0xff] %v187
    $region37: #{tpu_custom_call.1} parent=1 // pred_fallthru
      _
    // Predicated region
    $region38: #{tpu_custom_call.1} parent=1 // pred_check
      _
    $region39: #{tpu_custom_call.1} parent=1 // pred_check_branch
      %190 = sbr.rel (0) target = $region41
    $region40: #{tpu_custom_call.1} parent=1 // pred_region
      %s192 = ssub.s32 128, 128
      %193 = vsyncadd [#allocation5], %s192
      %s195 = sshll.u32 [#allocation8], 4
      %s196 = int_to_ptr.vmem [resolvable:$true] %s195
      %198 = dma.vmem_to_hbm [thread:$0]  %s196, 128, %s4, [#allocation5]
    $region41: #{tpu_custom_call.1} parent=1 // pred_fallthru
      _
    // Predicated region
    $region42: #{tpu_custom_call.1} parent=1 // pred_check
      _
    $region43: #{tpu_custom_call.1} parent=1 // pred_check_branch
      %200 = sbr.rel (0) target = $region45
    $region44: #{tpu_custom_call.1} parent=1 // pred_region
      %201 = dma.done [#allocation5], 128
    $region45: #{tpu_custom_call.1} parent=1 // pred_fallthru
      _
    %202 = vsyncpa [#allocation4], 1
    %203 = vsyncpa [#allocation7], 1
    %204 = vsyncpa [#allocation5], 1

</llo_original>
